<compile_context>
chip_gen: v7x
topology: tpu7x:2x2x1
jax: 0.10.0
libtpu: 0.0.40
codegen_flags: <defaults>
</compile_context>

<pallas_src>
import jax
import jax.numpy as jnp
from jax.experimental import pallas as pl
from jax.experimental.pallas import tpu as pltpu

_LANES = 128  # sublane extent used to pack the small bias vectors


def _mlp_kernel(x_ref, w1_ref, w2_ref, w3_ref, w4_ref, bias_ref, o_ref):
    # Feature-major layout: x block is (D, tile_b) bf16, batch on the lane axis.
    xt = x_ref[...]

    # Unpack the fused bias column vectors (one (128, 4) f32 operand).
    b = bias_ref[...]
    b1 = b[:, 0:1]        # (128, 1) = bias1 * s1 + t1   (BN folded)
    b2 = b[:64, 1:2]      # (64, 1)  = bias2 * s2 + t2   (BN folded)
    b3 = b[:32, 2:3]      # (32, 1)
    b4 = b[:1, 3:4]       # (1, 1)

    # Layer 1: Linear (BN folded into W1/b1) -> ReLU   (Dropout = identity)
    h = jnp.dot(w1_ref[...], xt, preferred_element_type=jnp.float32) + b1
    h = jnp.maximum(h, 0.0).astype(jnp.bfloat16)

    # Layer 2: Linear (BN folded into W2/b2) -> ReLU
    h = jnp.dot(w2_ref[...], h, preferred_element_type=jnp.float32) + b2
    h = jnp.maximum(h, 0.0).astype(jnp.bfloat16)

    # Layer 3: Linear -> ReLU
    h = jnp.dot(w3_ref[...], h, preferred_element_type=jnp.float32) + b3
    h = jnp.maximum(h, 0.0).astype(jnp.bfloat16)

    # Layer 4: Linear (M=1) -> Sigmoid (tanh form -> EUP slot).  Lane-dense
    # (1, tile_b) store.
    logits = jnp.dot(w4_ref[...], h, preferred_element_type=jnp.float32) + b4
    o_ref[...] = (0.5 * (jnp.tanh(0.5 * logits) + 1.0)).astype(o_ref.dtype)


def _round_up(a, m):
    return -(-a // m) * m


def _num_tensorcores():
    """Number of TensorCores behind one JAX device (v7x / v4 megacore -> 2)."""
    try:
        kind = jax.devices()[0].device_kind.lower()
    except Exception:
        return 1
    return 2 if ("v7" in kind or "v4" in kind) else 1


def _pick_tile_b(batch, num_cores, cap=4096):
    """Batch-tile (lane) size.

    Single-TC parts: one full-extent block when the batch fits under the cap
    (a block whose lane dim equals the array dim is always legal).  Multi-TC
    parts: split into >= num_cores roughly-equal tiles, rounded to a multiple
    of 256 so each tile fills the 256-wide MXU / lands lane-aligned.
    """
    if num_cores < 2:
        if batch <= cap:
            return batch
        tile = cap
    else:
        if batch <= 256:
            return batch
        per_core = -(-batch // num_cores)
        tile = min(cap, _round_up(per_core, 256))
    tile = min(tile, batch)
    # When the tile does not span the whole batch it must be a lane multiple.
    return max(128, (tile // 128) * 128)


def credit_risk_nn_v2(x, params, *, tile_b=None):
    """x: (B, D) float32.  Returns (B, 1) float32 (eval-mode forward)."""
    B, D = x.shape
    if tile_b is None:
        tile_b = _pick_tile_b(B, _num_tensorcores())
    tile_b = int(tile_b)

    # --- Fold BatchNorm1d (eval) + bias into the weights (plain-JAX glue). ---
    eps = 1e-5
    s1 = params["bn1_gamma"] * jax.lax.rsqrt(params["bn1_var"] + eps)
    t1 = params["bn1_beta"] - params["bn1_mean"] * s1
    s2 = params["bn2_gamma"] * jax.lax.rsqrt(params["bn2_var"] + eps)
    t2 = params["bn2_beta"] - params["bn2_mean"] * s2

    # Feature-major (transposed) weights, BN folded, bf16 for MXU rate.
    w1t = (s1[:, None] * params["w1"].T).astype(jnp.bfloat16)   # (128, D)
    w2t = (s2[:, None] * params["w2"].T).astype(jnp.bfloat16)   # (64, 128)
    w3t = params["w3"].T.astype(jnp.bfloat16)                   # (32, 64)
    w4t = params["w4"].T.astype(jnp.bfloat16)                   # (1, 32)
    b1 = params["b1"] * s1 + t1                                  # (128,)
    b2 = params["b2"] * s2 + t2                                  # (64,)

    # Pack all bias vectors as columns of one (128, 4) f32 operand (one DMA).
    def _col(v):
        v = v.astype(jnp.float32)
        return jnp.pad(v, (0, _LANES - v.shape[0]))[:, None]

    biases = jnp.concatenate(
        [_col(b1), _col(b2), _col(params["b3"]), _col(params["b4"])], axis=1)

    # Feature-major x (batch on lanes), bf16 halves the dominant HBM stream.
    x_t = x.T.astype(jnp.bfloat16)                               # (D, B)

    # No padding of x: cdiv grid; the final partial block's extra lanes hold
    # garbage that never crosses columns and is never written back.
    grid = (pl.cdiv(B, tile_b),)

    def full(arr):  # whole-array block, same block for every grid step
        return pl.BlockSpec(arr.shape, lambda i: (0, 0))

    in_specs = [
        pl.BlockSpec((D, tile_b), lambda i: (0, i)),   # x^T: tiled over lanes
        full(w1t), full(w2t), full(w3t), full(w4t),
        full(biases),
    ]
    out_spec = pl.BlockSpec((1, tile_b), lambda i: (0, i))       # lane-dense

    out = pl.pallas_call(
        _mlp_kernel,
        out_shape=jax.ShapeDtypeStruct((1, B), jnp.float32),
        grid_spec=pltpu.PrefetchScalarGridSpec(
            num_scalar_prefetch=0,
            grid=grid,
            in_specs=in_specs,
            out_specs=out_spec,
        ),
        compiler_params=pltpu.CompilerParams(
            dimension_semantics=("parallel",)),
    )(x_t, w1t, w2t, w3t, w4t, biases)

    return out.reshape(B, 1)


def init_params(key, input_dim):
    """Deterministic synthetic parameters matching the PyTorch module's shapes."""
    ks = jax.random.split(key, 12)
    f32 = jnp.float32

    def lin(kw, kb, fan_in, fan_out):
        bound = 1.0 / jnp.sqrt(jnp.asarray(fan_in, f32))
        w = jax.random.uniform(kw, (fan_in, fan_out), f32, -bound, bound)
        b = jax.random.uniform(kb, (fan_out,), f32, -bound, bound)
        return w, b

    w1, b1 = lin(ks[0], ks[1], input_dim, 128)
    w2, b2 = lin(ks[2], ks[3], 128, 64)
    w3, b3 = lin(ks[4], ks[5], 64, 32)
    w4, b4 = lin(ks[6], ks[7], 32, 1)

    return {
        "w1": w1, "b1": b1,
        "bn1_gamma": 1.0 + 0.1 * jax.random.normal(ks[8], (128,), f32),
        "bn1_beta":  0.1 * jax.random.normal(ks[9], (128,), f32),
        "bn1_mean":  0.05 * jax.random.normal(ks[10], (128,), f32),
        "bn1_var":   0.5 + jnp.abs(jax.random.normal(ks[11], (128,), f32)),
        "w2": w2, "b2": b2,
        "bn2_gamma": jnp.ones((64,), f32),
        "bn2_beta":  jnp.zeros((64,), f32),
        "bn2_mean":  jnp.zeros((64,), f32),
        "bn2_var":   jnp.ones((64,), f32),
        "w3": w3, "b3": b3,
        "w4": w4, "b4": b4,
    }


def _reference(x, params):
    """Pure-JAX f32 reference of the same eval-mode forward pass."""
    eps = 1e-5
    h = x @ params["w1"] + params["b1"]
    h = (h - params["bn1_mean"]) * jax.lax.rsqrt(params["bn1_var"] + eps)
    h = h * params["bn1_gamma"] + params["bn1_beta"]
    h = jnp.maximum(h, 0.0)
    h = h @ params["w2"] + params["b2"]
    h = (h - params["bn2_mean"]) * jax.lax.rsqrt(params["bn2_var"] + eps)
    h = h * params["bn2_gamma"] + params["bn2_beta"]
    h = jnp.maximum(h, 0.0)
    h = jnp.maximum(h @ params["w3"] + params["b3"], 0.0)
    h = h @ params["w4"] + params["b4"]
    return jax.nn.sigmoid(h)


if __name__ == "__main__":
    key = jax.random.PRNGKey(0)
    k_param, k_x = jax.random.split(key)

    batch, input_dim = 200, 16
    params = init_params(k_param, input_dim)
    x = jax.random.normal(k_x, (batch, input_dim), jnp.float32)
    ref = _reference(x, params)

    # bf16 MXU operands -> compare against the f32 reference with a relaxed
    # absolute tolerance on the sigmoid outputs (per the perf review).
    TOL = 2e-2

    # 1) Auto tile (full-extent single block on 1-TC parts, split on v7x).
    out = jax.block_until_ready(credit_risk_nn_v2(x, params))
    assert out.shape == (batch, 1)
    assert jnp.allclose(out, ref, atol=TOL, rtol=0.0), (
        f"auto-tile max abs diff {jnp.max(jnp.abs(out - ref))}")

    # 2) Forced small tile: exercises the multi-step grid + partial last block.
    out2 = jax.block_until_ready(credit_risk_nn_v2(x, params, tile_b=128))
    assert out2.shape == (batch, 1)
    assert jnp.allclose(out2, ref, atol=TOL, rtol=0.0), (
        f"tiled max abs diff {jnp.max(jnp.abs(out2 - ref))}")

    print("KERNEL_OK")
</pallas_src>

<mosaic_0001>
module attributes {stable_mosaic.version = 11 : i64} {
  func.func @_mlp_kernel(%arg0: i32, %arg1: memref<16x200xbf16, #tpu.memory_space<vmem>>, %arg2: memref<128x16xbf16, #tpu.memory_space<vmem>>, %arg3: memref<64x128xbf16, #tpu.memory_space<vmem>>, %arg4: memref<32x64xbf16, #tpu.memory_space<vmem>>, %arg5: memref<1x32xbf16, #tpu.memory_space<vmem>>, %arg6: memref<128x4xf32, #tpu.memory_space<vmem>>, %arg7: memref<1x200xf32, #tpu.memory_space<vmem>>) attributes {dimension_semantics = [#tpu.dimension_semantics<parallel>], iteration_bounds = array<i64: 1>, scalar_prefetch = 0 : i64, scratch_operands = 0 : i64, tpu.core_type = #tpu.core_type<tc>, window_params = [{transform_indices = @transform_0, window_bounds = array<i64: 16, 200>}, {pipeline_mode = #tpu.pipeline_mode<synchronous>, transform_indices = @transform_1, window_bounds = array<i64: 128, 16>}, {pipeline_mode = #tpu.pipeline_mode<synchronous>, transform_indices = @transform_2, window_bounds = array<i64: 64, 128>}, {pipeline_mode = #tpu.pipeline_mode<synchronous>, transform_indices = @transform_3, window_bounds = array<i64: 32, 64>}, {pipeline_mode = #tpu.pipeline_mode<synchronous>, transform_indices = @transform_4, window_bounds = array<i64: 1, 32>}, {pipeline_mode = #tpu.pipeline_mode<synchronous>, transform_indices = @transform_5, window_bounds = array<i64: 128, 4>}, {transform_indices = @transform_6, window_bounds = array<i64: 1, 200>}]} {
    %c0 = arith.constant 0 : index
    %c0_0 = arith.constant 0 : index
    %0 = vector.load %arg1[%c0, %c0_0] : memref<16x200xbf16, #tpu.memory_space<vmem>>, vector<16x200xbf16>
    %c0_1 = arith.constant 0 : index
    %c0_2 = arith.constant 0 : index
    %1 = vector.load %arg6[%c0_1, %c0_2] : memref<128x4xf32, #tpu.memory_space<vmem>>, vector<128x4xf32>
    %2 = vector.extract_strided_slice %1 {offsets = [0, 0], sizes = [128, 1], strides = [1, 1]} : vector<128x4xf32> to vector<128x1xf32>
    %3 = vector.extract_strided_slice %1 {offsets = [0, 1], sizes = [64, 1], strides = [1, 1]} : vector<128x4xf32> to vector<64x1xf32>
    %4 = vector.extract_strided_slice %1 {offsets = [0, 2], sizes = [32, 1], strides = [1, 1]} : vector<128x4xf32> to vector<32x1xf32>
    %5 = vector.extract_strided_slice %1 {offsets = [0, 3], sizes = [1, 1], strides = [1, 1]} : vector<128x4xf32> to vector<1x1xf32>
    %c0_3 = arith.constant 0 : index
    %c0_4 = arith.constant 0 : index
    %6 = vector.load %arg2[%c0_3, %c0_4] : memref<128x16xbf16, #tpu.memory_space<vmem>>, vector<128x16xbf16>
    %cst = arith.constant dense<0.000000e+00> : vector<128x200xf32>
    %7 = tpu.matmul %6, %0, %cst {dimension_numbers = #tpu.dot_dimension_numbers<[1], [0], [0], [1], [0, 0, 1, 1], [], []>} : vector<128x16xbf16>, vector<16x200xbf16>, vector<128x200xf32> -> vector<128x200xf32>
    %8 = vector.broadcast %2 : vector<128x1xf32> to vector<128x200xf32>
    %9 = arith.addf %7, %8 : vector<128x200xf32>
    %cst_5 = arith.constant 0.000000e+00 : f32
    %10 = vector.broadcast %cst_5 : f32 to vector<128x200xf32>
    %11 = arith.maximumf %9, %10 : vector<128x200xf32>
    %12 = arith.truncf %11 : vector<128x200xf32> to vector<128x200xbf16>
    %c0_6 = arith.constant 0 : index
    %c0_7 = arith.constant 0 : index
    %13 = vector.load %arg3[%c0_6, %c0_7] : memref<64x128xbf16, #tpu.memory_space<vmem>>, vector<64x128xbf16>
    %cst_8 = arith.constant dense<0.000000e+00> : vector<64x200xf32>
    %14 = tpu.matmul %13, %12, %cst_8 {dimension_numbers = #tpu.dot_dimension_numbers<[1], [0], [0], [1], [0, 0, 1, 1], [], []>} : vector<64x128xbf16>, vector<128x200xbf16>, vector<64x200xf32> -> vector<64x200xf32>
    %15 = vector.broadcast %3 : vector<64x1xf32> to vector<64x200xf32>
    %16 = arith.addf %14, %15 : vector<64x200xf32>
    %cst_9 = arith.constant 0.000000e+00 : f32
    %17 = vector.broadcast %cst_9 : f32 to vector<64x200xf32>
    %18 = arith.maximumf %16, %17 : vector<64x200xf32>
    %19 = arith.truncf %18 : vector<64x200xf32> to vector<64x200xbf16>
    %c0_10 = arith.constant 0 : index
    %c0_11 = arith.constant 0 : index
    %20 = vector.load %arg4[%c0_10, %c0_11] : memref<32x64xbf16, #tpu.memory_space<vmem>>, vector<32x64xbf16>
    %cst_12 = arith.constant dense<0.000000e+00> : vector<32x200xf32>
    %21 = tpu.matmul %20, %19, %cst_12 {dimension_numbers = #tpu.dot_dimension_numbers<[1], [0], [0], [1], [0, 0, 1, 1], [], []>} : vector<32x64xbf16>, vector<64x200xbf16>, vector<32x200xf32> -> vector<32x200xf32>
    %22 = vector.broadcast %4 : vector<32x1xf32> to vector<32x200xf32>
    %23 = arith.addf %21, %22 : vector<32x200xf32>
    %cst_13 = arith.constant 0.000000e+00 : f32
    %24 = vector.broadcast %cst_13 : f32 to vector<32x200xf32>
    %25 = arith.maximumf %23, %24 : vector<32x200xf32>
    %26 = arith.truncf %25 : vector<32x200xf32> to vector<32x200xbf16>
    %c0_14 = arith.constant 0 : index
    %c0_15 = arith.constant 0 : index
    %27 = vector.load %arg5[%c0_14, %c0_15] : memref<1x32xbf16, #tpu.memory_space<vmem>>, vector<1x32xbf16>
    %cst_16 = arith.constant dense<0.000000e+00> : vector<1x200xf32>
    %28 = tpu.matmul %27, %26, %cst_16 {dimension_numbers = #tpu.dot_dimension_numbers<[1], [0], [0], [1], [0, 0, 1, 1], [], []>} : vector<1x32xbf16>, vector<32x200xbf16>, vector<1x200xf32> -> vector<1x200xf32>
    %29 = vector.broadcast %5 : vector<1x1xf32> to vector<1x200xf32>
    %30 = arith.addf %28, %29 : vector<1x200xf32>
    %cst_17 = arith.constant 5.000000e-01 : f32
    %31 = vector.broadcast %cst_17 : f32 to vector<1x200xf32>
    %32 = arith.mulf %31, %30 : vector<1x200xf32>
    %33 = math.tanh %32 : vector<1x200xf32>
    %cst_18 = arith.constant 1.000000e+00 : f32
    %34 = vector.broadcast %cst_18 : f32 to vector<1x200xf32>
    %35 = arith.addf %33, %34 : vector<1x200xf32>
    %cst_19 = arith.constant 5.000000e-01 : f32
    %36 = vector.broadcast %cst_19 : f32 to vector<1x200xf32>
    %37 = arith.mulf %36, %35 : vector<1x200xf32>
    %c0_20 = arith.constant 0 : index
    %c0_21 = arith.constant 0 : index
    %38 = vector.load %arg7[%c0_20, %c0_21] : memref<1x200xf32, #tpu.memory_space<vmem>>, vector<1x200xf32>
    tpu.vector_store %arg7[%c0_20, %c0_21], %37 {strides = array<i32>} : memref<1x200xf32, #tpu.memory_space<vmem>>, vector<1x200xf32>,
    return
  }
  func.func @transform_0(%arg0: i32) -> (i32, i32) {
    %c0_i32 = arith.constant 0 : i32
    %c0_i32_0 = arith.constant 0 : i32
    return %c0_i32, %arg0 : i32, i32
  }
  func.func @transform_1(%arg0: i32) -> (i32, i32) {
    %c0_i32 = arith.constant 0 : i32
    %c0_i32_0 = arith.constant 0 : i32
    %c0_i32_1 = arith.constant 0 : i32
    return %c0_i32, %c0_i32_0 : i32, i32
  }
  func.func @transform_2(%arg0: i32) -> (i32, i32) {
    %c0_i32 = arith.constant 0 : i32
    %c0_i32_0 = arith.constant 0 : i32
    %c0_i32_1 = arith.constant 0 : i32
    return %c0_i32, %c0_i32_0 : i32, i32
  }
  func.func @transform_3(%arg0: i32) -> (i32, i32) {
    %c0_i32 = arith.constant 0 : i32
    %c0_i32_0 = arith.constant 0 : i32
    %c0_i32_1 = arith.constant 0 : i32
    return %c0_i32, %c0_i32_0 : i32, i32
  }
  func.func @transform_4(%arg0: i32) -> (i32, i32) {
    %c0_i32 = arith.constant 0 : i32
    %c0_i32_0 = arith.constant 0 : i32
    %c0_i32_1 = arith.constant 0 : i32
    return %c0_i32, %c0_i32_0 : i32, i32
  }
  func.func @transform_5(%arg0: i32) -> (i32, i32) {
    %c0_i32 = arith.constant 0 : i32
    %c0_i32_0 = arith.constant 0 : i32
    %c0_i32_1 = arith.constant 0 : i32
    return %c0_i32, %c0_i32_0 : i32, i32
  }
  func.func @transform_6(%arg0: i32) -> (i32, i32) {
    %c0_i32 = arith.constant 0 : i32
    %c0_i32_0 = arith.constant 0 : i32
    return %c0_i32, %arg0 : i32, i32
  }
}

</mosaic_0001>

<llo_original>
// kernel: tpu_custom_call.1
$region0: #{tpu_custom_call.1}
  #allocation0 [shape = 'u32[]', space=smem, size = 0x4, offset = 0x4, fixed_abs, tag = 'smem constant byte address 0x4 - core index']
  #allocation1 [shape = 'u32[144,128]{1,0:T(1,128)}', space=vmem, size = 0x12000, scoped, tag = 'internal scratch']
  %s0 = inlined_call_operand.vmem [shape: bf16[16,200], index: 0, kind: input, shape index: {}]
  %s1 = inlined_call_operand.vmem [shape: bf16[128,16], index: 1, kind: input, shape index: {}]
  %s2 = inlined_call_operand.vmem [shape: bf16[64,128], index: 2, kind: input, shape index: {}]
  %s3 = inlined_call_operand.vmem [shape: bf16[32,64], index: 3, kind: input, shape index: {}]
  %s4 = inlined_call_operand.vmem [shape: bf16[1,32], index: 4, kind: input, shape index: {}]
  %s5 = inlined_call_operand.vmem [shape: f32[128,4], index: 5, kind: input, shape index: {}]
  %s6 = inlined_call_operand.hbm [shape: f32[1,200], index: 6, kind: output, shape index: {}]
  %s7 = sld [smem:[#allocation0]]
  $region34: #{tpu_custom_call.1} parent=0
    _
  %s9 = ssub.s32 1, %s7
  %s10 = scalar_select 0, %s9, %s7
  $region1: #{tpu_custom_call.1} parent=0
    #allocation2 [shape = 'u8[1024]{0}', space=vmem, size = 0x400, scoped, tag = 'output window, operand 0, single buffered']
    #allocation3 [shape = 's32[1]{0}', space=sflag, size = 0x4, scoped, tag = 'scoped memory for tpu_custom_call.1']
    %11 = vsyncpa [#allocation3], 0
    // Predicated region
    $region2: #{tpu_custom_call.1} parent=1 // pred_check
      _
    $region3: #{tpu_custom_call.1} parent=1 // pred_check_branch
      %13 = sbr.rel (0) target = $region5
    $region4: #{tpu_custom_call.1} parent=1 // pred_region
      _
    $region5: #{tpu_custom_call.1} parent=1 // pred_fallthru
      _
    // Predicated region
    $region6: #{tpu_custom_call.1} parent=1 // pred_check
      _
    $region7: #{tpu_custom_call.1} parent=1 // pred_check_branch
      %15 = sbr.rel (0) target = $region9
    $region8: #{tpu_custom_call.1} parent=1 // pred_region
      _
    $region9: #{tpu_custom_call.1} parent=1 // pred_fallthru
      _
    // Predicated region
    $region10: #{tpu_custom_call.1} parent=1 // pred_check
      _
    $region11: #{tpu_custom_call.1} parent=1 // pred_check_branch
      %17 = sbr.rel (0) target = $region13
    $region12: #{tpu_custom_call.1} parent=1 // pred_region
      _
    $region13: #{tpu_custom_call.1} parent=1 // pred_fallthru
      _
    // Predicated region
    $region14: #{tpu_custom_call.1} parent=1 // pred_check
      _
    $region15: #{tpu_custom_call.1} parent=1 // pred_check_branch
      %19 = sbr.rel (0) target = $region17
    $region16: #{tpu_custom_call.1} parent=1 // pred_region
      _
    $region17: #{tpu_custom_call.1} parent=1 // pred_fallthru
      _
    // Predicated region
    $region18: #{tpu_custom_call.1} parent=1 // pred_check
      _
    $region19: #{tpu_custom_call.1} parent=1 // pred_check_branch
      %21 = sbr.rel (0) target = $region21
    $region20: #{tpu_custom_call.1} parent=1 // pred_region
      _
    $region21: #{tpu_custom_call.1} parent=1 // pred_fallthru
      _
    // Predicated region
    $region22: #{tpu_custom_call.1} parent=1 // pred_check
      _
    $region23: #{tpu_custom_call.1} parent=1 // pred_check_branch
      %23 = sbr.rel (0) target = $region25
    $region24: #{tpu_custom_call.1} parent=1 // pred_region
      _
    $region25: #{tpu_custom_call.1} parent=1 // pred_fallthru
      _
    %v25 = vld [vmem:[%s0] sm:$0xff]
    %v26 = vld [vmem:[%s0 + $0x8] sm:$0xff]
    %v27 = vld [vmem:[%s5] sm:$0xff]
    %v28 = vld [vmem:[%s5 + $0x8] sm:$0xff]
    %v29 = vld [vmem:[%s5 + $0x10] sm:$0xff]
    %v30 = vld [vmem:[%s5 + $0x18] sm:$0xff]
    %v31 = vld [vmem:[%s5 + $0x20] sm:$0xff]
    %v32 = vld [vmem:[%s5 + $0x28] sm:$0xff]
    %v33 = vld [vmem:[%s5 + $0x30] sm:$0xff]
    %v34 = vld [vmem:[%s5 + $0x38] sm:$0xff]
    %v35 = vld [vmem:[%s5 + $0x40] sm:$0xff]
    %v36 = vld [vmem:[%s5 + $0x48] sm:$0xff]
    %v37 = vld [vmem:[%s5 + $0x50] sm:$0xff]
    %v38 = vld [vmem:[%s5 + $0x58] sm:$0xff]
    %v39 = vld [vmem:[%s5 + $0x60] sm:$0xff]
    %v40 = vld [vmem:[%s5 + $0x68] sm:$0xff]
    %v41 = vld [vmem:[%s5 + $0x70] sm:$0xff]
    %v42 = vld [vmem:[%s5 + $0x78] sm:$0xff]
    %v43 = vld [vmem:[%s1] sm:$0xf]
    %v44 = vld [vmem:[%s1 + $0x4] sm:$0xf]
    %v45 = vld [vmem:[%s1 + $0x8] sm:$0xf]
    %v46 = vld [vmem:[%s1 + $0xc] sm:$0xf]
    %v47 = vld [vmem:[%s1 + $0x10] sm:$0xf]
    %v48 = vld [vmem:[%s1 + $0x14] sm:$0xf]
    %v49 = vld [vmem:[%s1 + $0x18] sm:$0xf]
    %v50 = vld [vmem:[%s1 + $0x1c] sm:$0xf]
    %v51 = vld [vmem:[%s1 + $0x20] sm:$0xf]
    %v52 = vld [vmem:[%s1 + $0x24] sm:$0xf]
    %v53 = vld [vmem:[%s1 + $0x28] sm:$0xf]
    %v54 = vld [vmem:[%s1 + $0x2c] sm:$0xf]
    %v55 = vld [vmem:[%s1 + $0x30] sm:$0xf]
    %v56 = vld [vmem:[%s1 + $0x34] sm:$0xf]
    %v57 = vld [vmem:[%s1 + $0x38] sm:$0xf]
    %v58 = vld [vmem:[%s1 + $0x3c] sm:$0xf]
    %60 = vset.pattern.permute.xlu0 0
    %61 = vperm.xlu0 %60, %v27
    %v62 = vpop.permute.xlu0 %61
    %65 = vset.pattern.permute.xlu0 0
    %66 = vperm.xlu0 %65, %v28
    %v67 = vpop.permute.xlu0 %66
    %70 = vset.pattern.permute.xlu0 0
    %71 = vperm.xlu0 %70, %v29
    %v72 = vpop.permute.xlu0 %71
    %75 = vset.pattern.permute.xlu0 0
    %76 = vperm.xlu0 %75, %v30
    %v77 = vpop.permute.xlu0 %76
    %80 = vset.pattern.permute.xlu0 0
    %81 = vperm.xlu0 %80, %v31
    %v82 = vpop.permute.xlu0 %81
    %85 = vset.pattern.permute.xlu0 0
    %86 = vperm.xlu0 %85, %v32
    %v87 = vpop.permute.xlu0 %86
    %90 = vset.pattern.permute.xlu0 0
    %91 = vperm.xlu0 %90, %v33
    %v92 = vpop.permute.xlu0 %91
    %95 = vset.pattern.permute.xlu0 0
    %96 = vperm.xlu0 %95, %v34
    %v97 = vpop.permute.xlu0 %96
    %100 = vset.pattern.permute.xlu0 0
    %101 = vperm.xlu0 %100, %v35
    %v102 = vpop.permute.xlu0 %101
    %105 = vset.pattern.permute.xlu0 0
    %106 = vperm.xlu0 %105, %v36
    %v107 = vpop.permute.xlu0 %106
    %110 = vset.pattern.permute.xlu0 0
    %111 = vperm.xlu0 %110, %v37
    %v112 = vpop.permute.xlu0 %111
    %115 = vset.pattern.permute.xlu0 0
    %116 = vperm.xlu0 %115, %v38
    %v117 = vpop.permute.xlu0 %116
    %120 = vset.pattern.permute.xlu0 0
    %121 = vperm.xlu0 %120, %v39
    %v122 = vpop.permute.xlu0 %121
    %125 = vset.pattern.permute.xlu0 0
    %126 = vperm.xlu0 %125, %v40
    %v127 = vpop.permute.xlu0 %126
    %130 = vset.pattern.permute.xlu0 0
    %131 = vperm.xlu0 %130, %v41
    %v132 = vpop.permute.xlu0 %131
    %135 = vset.pattern.permute.xlu0 0
    %136 = vperm.xlu0 %135, %v42
    %v137 = vpop.permute.xlu0 %136
    %v155 = vunpack.c.l.b16 %v43
    %v156 = vunpack.c.l.b16 %v44
    %v157 = vunpack.c.l.b16 %v45
    %v158 = vunpack.c.l.b16 %v46
    %v159 = vunpack.c.l.b16 %v47
    %v160 = vunpack.c.l.b16 %v48
    %v161 = vunpack.c.l.b16 %v49
    %v162 = vunpack.c.l.b16 %v50
    %v163 = vunpack.c.l.b16 %v51
    %v164 = vunpack.c.l.b16 %v52
    %v165 = vunpack.c.l.b16 %v53
    %v166 = vunpack.c.l.b16 %v54
    %v167 = vunpack.c.l.b16 %v55
    %v168 = vunpack.c.l.b16 %v56
    %v169 = vunpack.c.l.b16 %v57
    %v170 = vunpack.c.l.b16 %v58
    %v171 = vpack.c.b16 %v156, %v155
    %v172 = vpack.c.b16 %v158, %v157
    %v173 = vpack.c.b16 %v160, %v159
    %v174 = vpack.c.b16 %v162, %v161
    %v175 = vpack.c.b16 %v164, %v163
    %v176 = vpack.c.b16 %v166, %v165
    %v177 = vpack.c.b16 %v168, %v167
    %v178 = vpack.c.b16 %v170, %v169
    %v181 = vunpack.c.l.b16 %v25
    %v182 = vunpack.c.h.b16 %v25
    %v183 = vunpack.c.l.b16 %v26
    %v184 = vunpack.c.h.b16 %v26
    %v185 = vpack.c.b16 %v183, %v181
    %v186 = vpack.c.b16 %v184, %v182
    %vm189 = vcmask 130048
    %v191 = vsel %vm189, %v171, 0
    %v194 = vsel %vm189, %v172, 0
    %v197 = vsel %vm189, %v173, 0
    %v200 = vsel %vm189, %v174, 0
    %v203 = vsel %vm189, %v175, 0
    %v206 = vsel %vm189, %v176, 0
    %v209 = vsel %vm189, %v177, 0
    %v212 = vsel %vm189, %v178, 0
    %214 = vmatprep.subr.bf16.mxu0 %v186
    %215 = vmatpush1.bf16.msra.mxu0 %v185
    %216 = vmatprep.subr.bf16.mxu0 0
    %217 = vmatpush1.bf16.msra.mxu0 0
    %218 = vmatprep.subr.bf16.mxu0 0
    %219 = vmatpush1.bf16.msra.mxu0 0
    %220 = vmatprep.subr.bf16.mxu0 0
    %221 = vmatpush1.bf16.msra.mxu0 0
    %222 = vmatprep.subr.bf16.mxu0 0
    %223 = vmatpush1.bf16.msra.mxu0 0
    %224 = vmatprep.subr.bf16.mxu0 0
    %225 = vmatpush1.bf16.msra.mxu0 0
    %226 = vmatprep.subr.bf16.mxu0 0
    %227 = vmatpush1.bf16.msra.mxu0 0
    %228 = vmatprep.subr.bf16.mxu0 0
    %229 = vmatpush1.bf16.msra.mxu0 0
    %230 = vmatprep.subr.bf16.mxu0 0
    %231 = vmatpush1.bf16.msra.mxu0 0
    %232 = vmatprep.subr.bf16.mxu0 0
    %233 = vmatpush1.bf16.msra.mxu0 0
    %234 = vmatprep.subr.bf16.mxu0 0
    %235 = vmatpush1.bf16.msra.mxu0 0
    %236 = vmatprep.subr.bf16.mxu0 0
    %237 = vmatpush1.bf16.msra.mxu0 0
    %238 = vmatprep.subr.bf16.mxu0 0
    %239 = vmatpush1.bf16.msra.mxu0 0
    %240 = vmatprep.subr.bf16.mxu0 0
    %241 = vmatpush1.bf16.msra.mxu0 0
    %242 = vmatprep.subr.bf16.mxu0 0
    %243 = vmatpush1.bf16.msra.mxu0 0
    %244 = vmatprep.subr.bf16.mxu0 0
    %245 = vmatpush1.bf16.msra.mxu0 0
    %246 = vmatprep.mubr.bf16.mxu0 0
    %247 = vmatmul.mubr.bf16.gmra.mrb[0].mxu0 %v191
    %v248 = vpop.f32.mrb[0].mxu0
    %v249 = vadd.f32 %v62, %v248
    %v250 = vpop.f32.mrb[0].mxu0
    %v251 = vadd.f32 %v62, %v250
    %v252 = vpop.f32.mrb[0].mxu0
    %v253 = vadd.f32 %v67, %v252
    %v254 = vpop.f32.mrb[0].mxu0
    %v255 = vadd.f32 %v67, %v254
    %256 = vmatprep.mubr.bf16.mxu0 0
    %257 = vmatmul.mubr.bf16.gmra.mrb[0].mxu0 %v194
    %v258 = vpop.f32.mrb[0].mxu0
    %v259 = vadd.f32 %v72, %v258
    %v260 = vpop.f32.mrb[0].mxu0
    %v261 = vadd.f32 %v72, %v260
    %v262 = vpop.f32.mrb[0].mxu0
    %v263 = vadd.f32 %v77, %v262
    %v264 = vpop.f32.mrb[0].mxu0
    %v265 = vadd.f32 %v77, %v264
    %266 = vmatprep.mubr.bf16.mxu0 0
    %267 = vmatmul.mubr.bf16.gmra.mrb[0].mxu0 %v197
    %v268 = vpop.f32.mrb[0].mxu0
    %v269 = vadd.f32 %v82, %v268
    %v270 = vpop.f32.mrb[0].mxu0
    %v271 = vadd.f32 %v82, %v270
    %v272 = vpop.f32.mrb[0].mxu0
    %v273 = vadd.f32 %v87, %v272
    %v274 = vpop.f32.mrb[0].mxu0
    %v275 = vadd.f32 %v87, %v274
    %276 = vmatprep.mubr.bf16.mxu0 0
    %277 = vmatmul.mubr.bf16.gmra.mrb[0].mxu0 %v200
    %v278 = vpop.f32.mrb[0].mxu0
    %v279 = vadd.f32 %v92, %v278
    %v280 = vpop.f32.mrb[0].mxu0
    %v281 = vadd.f32 %v92, %v280
    %v282 = vpop.f32.mrb[0].mxu0
    %v283 = vadd.f32 %v97, %v282
    %v284 = vpop.f32.mrb[0].mxu0
    %v285 = vadd.f32 %v97, %v284
    %286 = vmatprep.mubr.bf16.mxu0 0
    %287 = vmatmul.mubr.bf16.gmra.mrb[0].mxu0 %v203
    %v288 = vpop.f32.mrb[0].mxu0
    %v289 = vadd.f32 %v102, %v288
    %v290 = vpop.f32.mrb[0].mxu0
    %v291 = vadd.f32 %v102, %v290
    %v292 = vpop.f32.mrb[0].mxu0
    %v293 = vadd.f32 %v107, %v292
    %v294 = vpop.f32.mrb[0].mxu0
    %v295 = vadd.f32 %v107, %v294
    %296 = vmatprep.mubr.bf16.mxu0 0
    %297 = vmatmul.mubr.bf16.gmra.mrb[0].mxu0 %v206
    %v298 = vpop.f32.mrb[0].mxu0
    %v299 = vadd.f32 %v112, %v298
    %v300 = vpop.f32.mrb[0].mxu0
    %v301 = vadd.f32 %v112, %v300
    %v302 = vpop.f32.mrb[0].mxu0
    %v303 = vadd.f32 %v117, %v302
    %v304 = vpop.f32.mrb[0].mxu0
    %v305 = vadd.f32 %v117, %v304
    %306 = vmatprep.mubr.bf16.mxu0 0
    %307 = vmatmul.mubr.bf16.gmra.mrb[0].mxu0 %v209
    %v308 = vpop.f32.mrb[0].mxu0
    %v309 = vadd.f32 %v122, %v308
    %v310 = vpop.f32.mrb[0].mxu0
    %v311 = vadd.f32 %v122, %v310
    %v312 = vpop.f32.mrb[0].mxu0
    %v313 = vadd.f32 %v127, %v312
    %v314 = vpop.f32.mrb[0].mxu0
    %v315 = vadd.f32 %v127, %v314
    %316 = vmatprep.mubr.bf16.mxu0 0
    %317 = vmatmul.mubr.bf16.gmra.mrb[0].mxu0 %v212
    %v318 = vpop.f32.mrb[0].mxu0
    %v319 = vadd.f32 %v132, %v318
    %v320 = vpop.f32.mrb[0].mxu0
    %v321 = vadd.f32 %v132, %v320
    %v322 = vpop.f32.mrb[0].mxu0
    %v323 = vadd.f32 %v137, %v322
    %v324 = vpop.f32.mrb[0].mxu0
    %v325 = vadd.f32 %v137, %v324
    %326 = vdwg.mxu0
    %v327 = vmax.f32 %v249, 0.0
    %v328 = vmax.f32 %v251, 0.0
    %v329 = vmax.f32 %v253, 0.0
    %v330 = vmax.f32 %v255, 0.0
    %v331 = vmax.f32 %v259, 0.0
    %v332 = vmax.f32 %v261, 0.0
    %v333 = vmax.f32 %v263, 0.0
    %v334 = vmax.f32 %v265, 0.0
    %v335 = vmax.f32 %v269, 0.0
    %v336 = vmax.f32 %v271, 0.0
    %v337 = vmax.f32 %v273, 0.0
    %v338 = vmax.f32 %v275, 0.0
    %v339 = vmax.f32 %v279, 0.0
    %v340 = vmax.f32 %v281, 0.0
    %v341 = vmax.f32 %v283, 0.0
    %v342 = vmax.f32 %v285, 0.0
    %v343 = vmax.f32 %v289, 0.0
    %v344 = vmax.f32 %v291, 0.0
    %v345 = vmax.f32 %v293, 0.0
    %v346 = vmax.f32 %v295, 0.0
    %v347 = vmax.f32 %v299, 0.0
    %v348 = vmax.f32 %v301, 0.0
    %v349 = vmax.f32 %v303, 0.0
    %v350 = vmax.f32 %v305, 0.0
    %v351 = vmax.f32 %v309, 0.0
    %v352 = vmax.f32 %v311, 0.0
    %v353 = vmax.f32 %v313, 0.0
    %v354 = vmax.f32 %v315, 0.0
    %v355 = vmax.f32 %v319, 0.0
    %v356 = vmax.f32 %v321, 0.0
    %v357 = vmax.f32 %v323, 0.0
    %v358 = vmax.f32 %v325, 0.0
    %v359 = vpack.c.bf16 %v329, %v327
    %v360 = vpack.c.bf16 %v330, %v328
    %v361 = vpack.c.bf16 %v333, %v331
    %v362 = vpack.c.bf16 %v334, %v332
    %v363 = vpack.c.bf16 %v337, %v335
    %v364 = vpack.c.bf16 %v338, %v336
    %v365 = vpack.c.bf16 %v341, %v339
    %v366 = vpack.c.bf16 %v342, %v340
    %v367 = vpack.c.bf16 %v345, %v343
    %v368 = vpack.c.bf16 %v346, %v344
    %v369 = vpack.c.bf16 %v349, %v347
    %v370 = vpack.c.bf16 %v350, %v348
    %v371 = vpack.c.bf16 %v353, %v351
    %v372 = vpack.c.bf16 %v354, %v352
    %v373 = vpack.c.bf16 %v357, %v355
    %v374 = vpack.c.bf16 %v358, %v356
    %v375 = vld [vmem:[%s2] sm:$0xf]
    %v376 = vld [vmem:[%s2 + $0x4] sm:$0xf]
    %v377 = vld [vmem:[%s2 + $0x8] sm:$0xf]
    %v378 = vld [vmem:[%s2 + $0xc] sm:$0xf]
    %v379 = vld [vmem:[%s2 + $0x10] sm:$0xf]
    %v380 = vld [vmem:[%s2 + $0x14] sm:$0xf]
    %v381 = vld [vmem:[%s2 + $0x18] sm:$0xf]
    %v382 = vld [vmem:[%s2 + $0x1c] sm:$0xf]
    %383 = vset.pattern.permute.xlu0 1
    %384 = vperm.xlu0 %383, %v27
    %v385 = vpop.permute.xlu0 %384
    %387 = vset.pattern.permute.xlu0 1
    %388 = vperm.xlu0 %387, %v28
    %v389 = vpop.permute.xlu0 %388
    %391 = vset.pattern.permute.xlu0 1
    %392 = vperm.xlu0 %391, %v29
    %v393 = vpop.permute.xlu0 %392
    %395 = vset.pattern.permute.xlu0 1
    %396 = vperm.xlu0 %395, %v30
    %v397 = vpop.permute.xlu0 %396
    %399 = vset.pattern.permute.xlu0 1
    %400 = vperm.xlu0 %399, %v31
    %v401 = vpop.permute.xlu0 %400
    %403 = vset.pattern.permute.xlu0 1
    %404 = vperm.xlu0 %403, %v32
    %v405 = vpop.permute.xlu0 %404
    %407 = vset.pattern.permute.xlu0 1
    %408 = vperm.xlu0 %407, %v33
    %v409 = vpop.permute.xlu0 %408
    %411 = vset.pattern.permute.xlu0 1
    %412 = vperm.xlu0 %411, %v34
    %v413 = vpop.permute.xlu0 %412
    %v423 = vunpack.c.l.b16 %v375
    %v424 = vunpack.c.l.b16 %v376
    %v425 = vunpack.c.l.b16 %v377
    %v426 = vunpack.c.l.b16 %v378
    %v427 = vunpack.c.l.b16 %v379
    %v428 = vunpack.c.l.b16 %v380
    %v429 = vunpack.c.l.b16 %v381
    %v430 = vunpack.c.l.b16 %v382
    %v431 = vpack.c.b16 %v424, %v423
    %v432 = vpack.c.b16 %v426, %v425
    %v433 = vpack.c.b16 %v428, %v427
    %v434 = vpack.c.b16 %v430, %v429
    %439 = vmatprep.subr.bf16.mxu0 %v360
    %440 = vmatpush1.bf16.msra.mxu0 %v359
    %441 = vmatprep.subr.bf16.mxu0 %v362
    %442 = vmatpush1.bf16.msra.mxu0 %v361
    %443 = vmatprep.subr.bf16.mxu0 %v364
    %444 = vmatpush1.bf16.msra.mxu0 %v363
    %445 = vmatprep.subr.bf16.mxu0 %v366
    %446 = vmatpush1.bf16.msra.mxu0 %v365
    %447 = vmatprep.subr.bf16.mxu0 %v368
    %448 = vmatpush1.bf16.msra.mxu0 %v367
    %449 = vmatprep.subr.bf16.mxu0 %v370
    %450 = vmatpush1.bf16.msra.mxu0 %v369
    %451 = vmatprep.subr.bf16.mxu0 %v372
    %452 = vmatpush1.bf16.msra.mxu0 %v371
    %453 = vmatprep.subr.bf16.mxu0 %v374
    %454 = vmatpush1.bf16.msra.mxu0 %v373
    %455 = vmatprep.subr.bf16.mxu0 0
    %456 = vmatpush1.bf16.msra.mxu0 0
    %457 = vmatprep.subr.bf16.mxu0 0
    %458 = vmatpush1.bf16.msra.mxu0 0
    %459 = vmatprep.subr.bf16.mxu0 0
    %460 = vmatpush1.bf16.msra.mxu0 0
    %461 = vmatprep.subr.bf16.mxu0 0
    %462 = vmatpush1.bf16.msra.mxu0 0
    %463 = vmatprep.subr.bf16.mxu0 0
    %464 = vmatpush1.bf16.msra.mxu0 0
    %465 = vmatprep.subr.bf16.mxu0 0
    %466 = vmatpush1.bf16.msra.mxu0 0
    %467 = vmatprep.subr.bf16.mxu0 0
    %468 = vmatpush1.bf16.msra.mxu0 0
    %469 = vmatprep.subr.bf16.mxu0 0
    %470 = vmatpush1.bf16.msra.mxu0 0
    %471 = vmatprep.mubr.bf16.mxu0 0
    %472 = vmatmul.mubr.bf16.gmra.mrb[0].mxu0 %v431
    %v473 = vpop.f32.mrb[0].mxu0
    %v474 = vadd.f32 %v385, %v473
    %v475 = vpop.f32.mrb[0].mxu0
    %v476 = vadd.f32 %v385, %v475
    %v477 = vpop.f32.mrb[0].mxu0
    %v478 = vadd.f32 %v389, %v477
    %v479 = vpop.f32.mrb[0].mxu0
    %v480 = vadd.f32 %v389, %v479
    %481 = vmatprep.mubr.bf16.mxu0 0
    %482 = vmatmul.mubr.bf16.gmra.mrb[0].mxu0 %v432
    %v483 = vpop.f32.mrb[0].mxu0
    %v484 = vadd.f32 %v393, %v483
    %v485 = vpop.f32.mrb[0].mxu0
    %v486 = vadd.f32 %v393, %v485
    %v487 = vpop.f32.mrb[0].mxu0
    %v488 = vadd.f32 %v397, %v487
    %v489 = vpop.f32.mrb[0].mxu0
    %v490 = vadd.f32 %v397, %v489
    %491 = vmatprep.mubr.bf16.mxu0 0
    %492 = vmatmul.mubr.bf16.gmra.mrb[0].mxu0 %v433
    %v493 = vpop.f32.mrb[0].mxu0
    %v494 = vadd.f32 %v401, %v493
    %v495 = vpop.f32.mrb[0].mxu0
    %v496 = vadd.f32 %v401, %v495
    %v497 = vpop.f32.mrb[0].mxu0
    %v498 = vadd.f32 %v405, %v497
    %v499 = vpop.f32.mrb[0].mxu0
    %v500 = vadd.f32 %v405, %v499
    %501 = vmatprep.mubr.bf16.mxu0 0
    %502 = vmatmul.mubr.bf16.gmra.mrb[0].mxu0 %v434
    %v503 = vpop.f32.mrb[0].mxu0
    %v504 = vadd.f32 %v409, %v503
    %v505 = vpop.f32.mrb[0].mxu0
    %v506 = vadd.f32 %v409, %v505
    %v507 = vpop.f32.mrb[0].mxu0
    %v508 = vadd.f32 %v413, %v507
    %v509 = vpop.f32.mrb[0].mxu0
    %v510 = vadd.f32 %v413, %v509
    %511 = vdwg.mxu0
    %v512 = vmax.f32 %v474, 0.0
    %v513 = vmax.f32 %v476, 0.0
    %v514 = vmax.f32 %v478, 0.0
    %v515 = vmax.f32 %v480, 0.0
    %v516 = vmax.f32 %v484, 0.0
    %v517 = vmax.f32 %v486, 0.0
    %v518 = vmax.f32 %v488, 0.0
    %v519 = vmax.f32 %v490, 0.0
    %v520 = vmax.f32 %v494, 0.0
    %v521 = vmax.f32 %v496, 0.0
    %v522 = vmax.f32 %v498, 0.0
    %v523 = vmax.f32 %v500, 0.0
    %v524 = vmax.f32 %v504, 0.0
    %v525 = vmax.f32 %v506, 0.0
    %v526 = vmax.f32 %v508, 0.0
    %v527 = vmax.f32 %v510, 0.0
    %v528 = vpack.c.bf16 %v514, %v512
    %v529 = vpack.c.bf16 %v515, %v513
    %v530 = vpack.c.bf16 %v518, %v516
    %v531 = vpack.c.bf16 %v519, %v517
    %v532 = vpack.c.bf16 %v522, %v520
    %v533 = vpack.c.bf16 %v523, %v521
    %v534 = vpack.c.bf16 %v526, %v524
    %v535 = vpack.c.bf16 %v527, %v525
    %v536 = vld [vmem:[%s3] sm:$0xf]
    %v537 = vld [vmem:[%s3 + $0x4] sm:$0xf]
    %v538 = vld [vmem:[%s3 + $0x8] sm:$0xf]
    %v539 = vld [vmem:[%s3 + $0xc] sm:$0xf]
    %540 = vset.pattern.permute.xlu0 2
    %541 = vperm.xlu0 %540, %v27
    %v542 = vpop.permute.xlu0 %541
    %544 = vset.pattern.permute.xlu0 2
    %545 = vperm.xlu0 %544, %v28
    %v546 = vpop.permute.xlu0 %545
    %548 = vset.pattern.permute.xlu0 2
    %549 = vperm.xlu0 %548, %v29
    %v550 = vpop.permute.xlu0 %549
    %552 = vset.pattern.permute.xlu0 2
    %553 = vperm.xlu0 %552, %v30
    %v554 = vpop.permute.xlu0 %553
    %v560 = vunpack.c.l.b16 %v536
    %v561 = vunpack.c.l.b16 %v537
    %v562 = vunpack.c.l.b16 %v538
    %v563 = vunpack.c.l.b16 %v539
    %v564 = vpack.c.b16 %v561, %v560
    %v565 = vpack.c.b16 %v563, %v562
    %vm566 = vcmask 523264
    %v568 = vsel %vm566, %v564, 0
    %v571 = vsel %vm566, %v565, 0
    %573 = vmatprep.subr.bf16.mxu0 %v529
    %574 = vmatpush1.bf16.msra.mxu0 %v528
    %575 = vmatprep.subr.bf16.mxu0 %v531
    %576 = vmatpush1.bf16.msra.mxu0 %v530
    %577 = vmatprep.subr.bf16.mxu0 %v533
    %578 = vmatpush1.bf16.msra.mxu0 %v532
    %579 = vmatprep.subr.bf16.mxu0 %v535
    %580 = vmatpush1.bf16.msra.mxu0 %v534
    %581 = vmatprep.subr.bf16.mxu0 0
    %582 = vmatpush1.bf16.msra.mxu0 0
    %583 = vmatprep.subr.bf16.mxu0 0
    %584 = vmatpush1.bf16.msra.mxu0 0
    %585 = vmatprep.subr.bf16.mxu0 0
    %586 = vmatpush1.bf16.msra.mxu0 0
    %587 = vmatprep.subr.bf16.mxu0 0
    %588 = vmatpush1.bf16.msra.mxu0 0
    %589 = vmatprep.subr.bf16.mxu0 0
    %590 = vmatpush1.bf16.msra.mxu0 0
    %591 = vmatprep.subr.bf16.mxu0 0
    %592 = vmatpush1.bf16.msra.mxu0 0
    %593 = vmatprep.subr.bf16.mxu0 0
    %594 = vmatpush1.bf16.msra.mxu0 0
    %595 = vmatprep.subr.bf16.mxu0 0
    %596 = vmatpush1.bf16.msra.mxu0 0
    %597 = vmatprep.subr.bf16.mxu0 0
    %598 = vmatpush1.bf16.msra.mxu0 0
    %599 = vmatprep.subr.bf16.mxu0 0
    %600 = vmatpush1.bf16.msra.mxu0 0
    %601 = vmatprep.subr.bf16.mxu0 0
    %602 = vmatpush1.bf16.msra.mxu0 0
    %603 = vmatprep.subr.bf16.mxu0 0
    %604 = vmatpush1.bf16.msra.mxu0 0
    %605 = vmatprep.mubr.bf16.mxu0 0
    %606 = vmatmul.mubr.bf16.gmra.mrb[0].mxu0 %v568
    %v607 = vpop.f32.mrb[0].mxu0
    %v608 = vadd.f32 %v542, %v607
    %v609 = vpop.f32.mrb[0].mxu0
    %v610 = vadd.f32 %v542, %v609
    %v611 = vpop.f32.mrb[0].mxu0
    %v612 = vadd.f32 %v546, %v611
    %v613 = vpop.f32.mrb[0].mxu0
    %v614 = vadd.f32 %v546, %v613
    %615 = vmatprep.mubr.bf16.mxu0 0
    %616 = vmatmul.mubr.bf16.gmra.mrb[0].mxu0 %v571
    %v617 = vpop.f32.mrb[0].mxu0
    %v618 = vadd.f32 %v550, %v617
    %v619 = vpop.f32.mrb[0].mxu0
    %v620 = vadd.f32 %v550, %v619
    %v621 = vpop.f32.mrb[0].mxu0
    %v622 = vadd.f32 %v554, %v621
    %v623 = vpop.f32.mrb[0].mxu0
    %v624 = vadd.f32 %v554, %v623
    %625 = vdwg.mxu0
    %v626 = vmax.f32 %v608, 0.0
    %v627 = vmax.f32 %v610, 0.0
    %v628 = vmax.f32 %v612, 0.0
    %v629 = vmax.f32 %v614, 0.0
    %v630 = vmax.f32 %v618, 0.0
    %v631 = vmax.f32 %v620, 0.0
    %v632 = vmax.f32 %v622, 0.0
    %v633 = vmax.f32 %v624, 0.0
    %v634 = vpack.c.bf16 %v628, %v626
    %v635 = vpack.c.bf16 %v629, %v627
    %v636 = vpack.c.bf16 %v632, %v630
    %v637 = vpack.c.bf16 %v633, %v631
    %v638 = vld [vmem:[%s4] sm:$0x1]
    %639 = vset.pattern.permute.xlu0 3
    %640 = vperm.xlu0 %639, %v27
    %v641 = vpop.permute.xlu0 %640
    %vm643 = vcmask 261120
    %v645 = vsel %vm643, %v638, 0
    %647 = vmatprep.subr.bf16.mxu0 %v635
    %648 = vmatpush1.bf16.msra.mxu0 %v634
    %649 = vmatprep.subr.bf16.mxu0 %v637
    %650 = vmatpush1.bf16.msra.mxu0 %v636
    %651 = vmatprep.subr.bf16.mxu0 0
    %652 = vmatpush1.bf16.msra.mxu0 0
    %653 = vmatprep.subr.bf16.mxu0 0
    %654 = vmatpush1.bf16.msra.mxu0 0
    %655 = vmatprep.subr.bf16.mxu0 0
    %656 = vmatpush1.bf16.msra.mxu0 0
    %657 = vmatprep.subr.bf16.mxu0 0
    %658 = vmatpush1.bf16.msra.mxu0 0
    %659 = vmatprep.subr.bf16.mxu0 0
    %660 = vmatpush1.bf16.msra.mxu0 0
    %661 = vmatprep.subr.bf16.mxu0 0
    %662 = vmatpush1.bf16.msra.mxu0 0
    %663 = vmatprep.subr.bf16.mxu0 0
    %664 = vmatpush1.bf16.msra.mxu0 0
    %665 = vmatprep.subr.bf16.mxu0 0
    %666 = vmatpush1.bf16.msra.mxu0 0
    %667 = vmatprep.subr.bf16.mxu0 0
    %668 = vmatpush1.bf16.msra.mxu0 0
    %669 = vmatprep.subr.bf16.mxu0 0
    %670 = vmatpush1.bf16.msra.mxu0 0
    %671 = vmatprep.subr.bf16.mxu0 0
    %672 = vmatpush1.bf16.msra.mxu0 0
    %673 = vmatprep.subr.bf16.mxu0 0
    %674 = vmatpush1.bf16.msra.mxu0 0
    %675 = vmatprep.subr.bf16.mxu0 0
    %676 = vmatpush1.bf16.msra.mxu0 0
    %677 = vmatprep.subr.bf16.mxu0 0
    %678 = vmatpush1.bf16.msra.mxu0 0
    %679 = vmatprep.mubr.bf16.mxu0 0
    %680 = vmatmul.mubr.bf16.gmra.mrb[0].mxu0 %v645
    %v681 = vpop.f32.mrb[0].mxu0
    %v682 = vadd.f32 %v641, %v681
    %v683 = vpop.f32.mrb[0].mxu0
    %v684 = vadd.f32 %v641, %v683
    %v685 = vpop.f32.mrb[0].mxu0
    %v686 = vpop.f32.mrb[0].mxu0
    %687 = vdwg.mxu0
    %v688 = vmul.f32 %v682, 0.5
    %v689 = vmul.f32 %v684, 0.5
    %v690 = vtanh.pop %v688
    %v691 = vtanh.pop %v689
    %v692 = vadd.f32 %v690, 1.0
    %v693 = vadd.f32 %v691, 1.0
    %v694 = vmul.f32 %v692, 0.5
    %v695 = vmul.f32 %v693, 0.5
    %v698 = vcombine.low %v694, %v695
    %v700 = vunpack.c.l.s4 1966171168
    %v701 = vunpack.c.0.s8 %v700
    %v702 = vlaneseq
    %v703 = vshrl.u32 %v702, 7
    %v704 = vsub.s32 %v701, %v703
    %v705 = vrot.slane %v698, %v704
    %v707 = vunpack.c.l.s4 1966171168
    %v708 = vunpack.c.0.s8 %v707
    %v709 = vlaneseq
    %v710 = vshrl.u32 %v709, 7
    %v711 = vsub.s32 %v708, %v710
    %v712 = vrot.slane %v705, %v711
    %v714 = vlaneseq
    %vm715 = vcmp.ge.s32.totalorder %v714, 0
    %vm716 = vcmp.lt.s32.totalorder %v714, 200
    %vm717 = vmand %vm715, %vm716
    %718 = vst.msk [vmem:[#allocation2] sm:$0x3] %vm717, %v712
    // Predicated region
    $region26: #{tpu_custom_call.1} parent=1 // pred_check
      _
    $region27: #{tpu_custom_call.1} parent=1 // pred_check_branch
      %720 = sbr.rel (0) target = $region29
    $region28: #{tpu_custom_call.1} parent=1 // pred_region
      %s722 = ssub.s32 32, 32
      %723 = vsyncadd [#allocation3], %s722
      %s725 = sshll.u32 [#allocation2], 4
      %s726 = int_to_ptr.vmem [resolvable:$true] %s725
      %728 = dma.vmem_to_hbm [thread:$0]  %s726, 32, %s6, [#allocation3]
    $region29: #{tpu_custom_call.1} parent=1 // pred_fallthru
      _
    // Predicated region
    $region30: #{tpu_custom_call.1} parent=1 // pred_check
      _
    $region31: #{tpu_custom_call.1} parent=1 // pred_check_branch
      %730 = sbr.rel (0) target = $region33
    $region32: #{tpu_custom_call.1} parent=1 // pred_region
      %731 = dma.done [#allocation3], 32
    $region33: #{tpu_custom_call.1} parent=1 // pred_fallthru
      _
    %732 = vsyncpa [#allocation3], 1

</llo_original>
